<compile_context>
chip_gen: v6e
topology: v6e:2x2x1
jax: 0.10.0
libtpu: 0.0.40
codegen_flags: <defaults>
</compile_context>

<pallas_src>
import functools

import jax
import jax.numpy as jnp
from jax.experimental import pallas as pl
from jax.experimental.pallas import tpu as pltpu


def _rope_freq_kernel(pos_ref, invf_ref, cos_ref, sin_ref):
    # pos_ref : (row_tile, 1)    fp32 positions (rows = B*S, flattened)
    # invf_ref: (1, half)        fp32 inverse frequencies (grid-invariant block)
    # cos_ref, sin_ref: (row_tile, half) fp32
    angle = pos_ref[...] * invf_ref[...]   # VPU broadcast multiply -> (row_tile, half)
    cos_ref[...] = jnp.cos(angle)          # EUP transcendental
    sin_ref[...] = jnp.sin(angle)          # EUP transcendental


def _pick_row_tile(rows: int, half: int,
                   *, target_bytes: int = 2 * 1024 * 1024, max_tile: int = 8192) -> int:
    """Largest legal row tile: ~target_bytes of fp32 per output block, sublane aligned."""
    target_rows = max(8, target_bytes // (4 * max(half, 1)))
    tile = min(max_tile, (target_rows // 8) * 8)
    if rows <= tile:
        return rows   # full-extent block: always a legal block shape
    return tile       # multiple of 8; last block may be partial (pl.cdiv grid)


def llama4_text_rotary_embedding(x, position_ids, *, head_dim, rope_theta):
    """Returns freq_cis of shape (B, S, head_dim // 2), complex64."""
    del x  # x only determines device placement / autocast context in the PyTorch module.
    assert head_dim % 2 == 0, "head_dim must be even"

    B, S = position_ids.shape
    half = head_dim // 2
    rows = B * S

    # inv_freq buffer (fp32) — identical to the PyTorch registered buffer.
    exponent = jnp.arange(0, head_dim, 2, dtype=jnp.float32) / float(head_dim)
    inv_freq = (1.0 / (float(rope_theta) ** exponent)).reshape(1, half)

    pos2d = position_ids.reshape(rows, 1).astype(jnp.float32)

    row_tile = _pick_row_tile(rows, half)
    grid = (pl.cdiv(rows, row_tile),)

    cos2d, sin2d = pl.pallas_call(
        _rope_freq_kernel,
        out_shape=(
            jax.ShapeDtypeStruct((rows, half), jnp.float32),
            jax.ShapeDtypeStruct((rows, half), jnp.float32),
        ),
        grid_spec=pltpu.PrefetchScalarGridSpec(
            num_scalar_prefetch=0,
            grid=grid,
            in_specs=[
                pl.BlockSpec((row_tile, 1), lambda i: (i, 0)),
                pl.BlockSpec((1, half), lambda i: (0, 0)),
            ],
            out_specs=(
                pl.BlockSpec((row_tile, half), lambda i: (i, 0)),
                pl.BlockSpec((row_tile, half), lambda i: (i, 0)),
            ),
        ),
        compiler_params=pltpu.CompilerParams(
            dimension_semantics=("parallel",),
        ),
    )(pos2d, inv_freq)

    cos = cos2d.reshape(B, S, half)
    sin = sin2d.reshape(B, S, half)
    # torch.polar(ones, angle) == cos + i*sin; complex packing is glue outside Pallas
    # (Pallas TPU kernels have no complex dtype).
    return jax.lax.complex(cos, sin)


def _reference(position_ids, head_dim, rope_theta):
    half = head_dim // 2
    exponent = jnp.arange(0, head_dim, 2, dtype=jnp.float32) / float(head_dim)
    inv_freq = 1.0 / (float(rope_theta) ** exponent)            # (half,)
    angle = position_ids.astype(jnp.float32)[:, :, None] * inv_freq[None, None, :]
    return jax.lax.complex(jnp.cos(angle), jnp.sin(angle))


if __name__ == "__main__":
    key = jax.random.PRNGKey(0)
    batch, seq, head_dim = 2, 8, 32
    rope_theta = 500000.0

    # x is only used for device placement in the PyTorch module; kept for API parity.
    x = jax.random.normal(key, (batch, seq, head_dim), dtype=jnp.float32).astype(jnp.bfloat16)
    position_ids = jnp.tile(jnp.arange(seq, dtype=jnp.int32)[None, :], (batch, 1))

    rotary = jax.jit(functools.partial(
        llama4_text_rotary_embedding, head_dim=head_dim, rope_theta=rope_theta))
    freq_cis = jax.block_until_ready(rotary(x, position_ids))

    ref = _reference(position_ids, head_dim, rope_theta)

    assert freq_cis.shape == (batch, seq, head_dim // 2), freq_cis.shape
    assert freq_cis.dtype == jnp.complex64, freq_cis.dtype
    assert jnp.allclose(freq_cis.real, ref.real, atol=1e-4, rtol=1e-4)
    assert jnp.allclose(freq_cis.imag, ref.imag, atol=1e-4, rtol=1e-4)

    print("KERNEL_OK")
</pallas_src>

<mosaic_0001>
module attributes {stable_mosaic.version = 11 : i64} {
  func.func @_rope_freq_kernel(%arg0: i32, %arg1: memref<16x1xf32, #tpu.memory_space<vmem>>, %arg2: memref<1x16xf32, #tpu.memory_space<vmem>>, %arg3: memref<16x16xf32, #tpu.memory_space<vmem>>, %arg4: memref<16x16xf32, #tpu.memory_space<vmem>>) attributes {dimension_semantics = [#tpu.dimension_semantics<parallel>], iteration_bounds = array<i64: 1>, scalar_prefetch = 0 : i64, scratch_operands = 0 : i64, tpu.core_type = #tpu.core_type<tc>, window_params = [{transform_indices = @transform_0, window_bounds = array<i64: 16, 1>}, {pipeline_mode = #tpu.pipeline_mode<synchronous>, transform_indices = @transform_1, window_bounds = array<i64: 1, 16>}, {transform_indices = @transform_2, window_bounds = array<i64: 16, 16>}, {transform_indices = @transform_3, window_bounds = array<i64: 16, 16>}]} {
    %c0 = arith.constant 0 : index
    %c0_0 = arith.constant 0 : index
    %0 = vector.load %arg1[%c0, %c0_0] : memref<16x1xf32, #tpu.memory_space<vmem>>, vector<16x1xf32>
    %c0_1 = arith.constant 0 : index
    %c0_2 = arith.constant 0 : index
    %1 = vector.load %arg2[%c0_1, %c0_2] : memref<1x16xf32, #tpu.memory_space<vmem>>, vector<1x16xf32>
    %2 = vector.broadcast %0 : vector<16x1xf32> to vector<16x16xf32>
    %3 = vector.broadcast %1 : vector<1x16xf32> to vector<16x16xf32>
    %4 = arith.mulf %2, %3 : vector<16x16xf32>
    %5 = math.cos %4 : vector<16x16xf32>
    %c0_3 = arith.constant 0 : index
    %c0_4 = arith.constant 0 : index
    %6 = vector.load %arg3[%c0_3, %c0_4] : memref<16x16xf32, #tpu.memory_space<vmem>>, vector<16x16xf32>
    tpu.vector_store %arg3[%c0_3, %c0_4], %5 {strides = array<i32>} : memref<16x16xf32, #tpu.memory_space<vmem>>, vector<16x16xf32>,
    %7 = math.sin %4 : vector<16x16xf32>
    %c0_5 = arith.constant 0 : index
    %c0_6 = arith.constant 0 : index
    %8 = vector.load %arg4[%c0_5, %c0_6] : memref<16x16xf32, #tpu.memory_space<vmem>>, vector<16x16xf32>
    tpu.vector_store %arg4[%c0_5, %c0_6], %7 {strides = array<i32>} : memref<16x16xf32, #tpu.memory_space<vmem>>, vector<16x16xf32>,
    return
  }
  func.func @transform_0(%arg0: i32) -> (i32, i32) {
    %c0_i32 = arith.constant 0 : i32
    %c0_i32_0 = arith.constant 0 : i32
    return %arg0, %c0_i32 : i32, i32
  }
  func.func @transform_1(%arg0: i32) -> (i32, i32) {
    %c0_i32 = arith.constant 0 : i32
    %c0_i32_0 = arith.constant 0 : i32
    %c0_i32_1 = arith.constant 0 : i32
    return %c0_i32, %c0_i32_0 : i32, i32
  }
  func.func @transform_2(%arg0: i32) -> (i32, i32) {
    %c0_i32 = arith.constant 0 : i32
    %c0_i32_0 = arith.constant 0 : i32
    return %arg0, %c0_i32 : i32, i32
  }
  func.func @transform_3(%arg0: i32) -> (i32, i32) {
    %c0_i32 = arith.constant 0 : i32
    %c0_i32_0 = arith.constant 0 : i32
    return %arg0, %c0_i32 : i32, i32
  }
}

</mosaic_0001>

<llo_original>
// kernel: custom-call
$region0: #{custom-call}
  %s0 = inlined_call_operand.vmem [shape: f32[2,8,16], index: 0, kind: input, shape index: {}]
  %s1 = inlined_call_operand.vmem [shape: f32[2,8,16], index: 1, kind: input, shape index: {}]
  %s2 = inlined_call_operand.hbm [shape: c64[2,8,16], index: 2, kind: output, shape index: {}]
  %s3 = scalar_lea.hbm %s2, 256
  $region1: #{custom-call} parent=0
    #allocation0 [shape = 's32[1]{0}', space=sflag, size = 0x4, scoped, tag = 'scoped memory for custom-call']
    %4 = vsyncpa [#allocation0], 0
    %s5 = sshll.u32 %s0, 4
    %s6 = int_to_ptr.vmem [resolvable:$true] %s5
    %8 = dma.vmem_to_hbm [thread:$0]  %s6, 256, %s2, [#allocation0]
    %9 = dma.done [#allocation0], 256
    %10 = vsyncpa [#allocation0], 1
  $region2: #{custom-call} parent=0
    #allocation1 [shape = 's32[1]{0}', space=sflag, size = 0x4, scoped, tag = 'scoped memory for custom-call']
    %11 = vsyncpa [#allocation1], 0
    %s12 = sshll.u32 %s1, 4
    %s13 = int_to_ptr.vmem [resolvable:$true] %s12
    %15 = dma.vmem_to_hbm [thread:$0]  %s13, 256, %s3, [#allocation1]
    %16 = dma.done [#allocation1], 256
    %17 = vsyncpa [#allocation1], 1

// kernel: llama4_text_rotary_embedding.1
$region0: #{llama4_text_rotary_embedding.1}
  #allocation0 [shape = 'u32[]', space=smem, size = 0x4, offset = 0x4, fixed_abs, tag = 'smem constant byte address 0x4 - core index']
  #allocation1 [shape = 'u32[144,128]{1,0:T(1,128)}', space=vmem, size = 0x12000, scoped, tag = 'internal scratch']
  %s0 = inlined_call_operand.vmem [shape: f32[16,1], index: 0, kind: input, shape index: {}]
  %s1 = inlined_call_operand.vmem [shape: f32[1,16], index: 1, kind: input, shape index: {}]
  %s2 = inlined_call_operand.vmem [shape: f32[16,16], index: 2, kind: output, shape index: {0}]
  %s3 = inlined_call_operand.vmem [shape: f32[16,16], index: 3, kind: output, shape index: {1}]
  %4 = xla_tuple %s2, %s3
  %s5 = sld [smem:[#allocation0]]
  $region26: #{llama4_text_rotary_embedding.1} parent=0
    _
  %s7 = ssub.s32 1, %s5
  %s8 = scalar_select 0, %s7, %s5
  // Predicated region
  $region2: #{llama4_text_rotary_embedding.1} parent=0 // pred_check
    _
  $region3: #{llama4_text_rotary_embedding.1} parent=0 // pred_check_branch
    %10 = sbr.rel (0) target = $region5
  $region4: #{llama4_text_rotary_embedding.1} parent=0 // pred_region
    _
  $region5: #{llama4_text_rotary_embedding.1} parent=0 // pred_fallthru
    _
  // Predicated region
  $region6: #{llama4_text_rotary_embedding.1} parent=0 // pred_check
    _
  $region7: #{llama4_text_rotary_embedding.1} parent=0 // pred_check_branch
    %12 = sbr.rel (0) target = $region9
  $region8: #{llama4_text_rotary_embedding.1} parent=0 // pred_region
    _
  $region9: #{llama4_text_rotary_embedding.1} parent=0 // pred_fallthru
    _
  %v13 = vld [vmem:[%s0] sm:$0xff]
  %v14 = vld [vmem:[%s0 + $0x8] sm:$0xff]
  %v15 = vld [vmem:[%s1] sm:$0x1]
  %17 = vset.pattern.permute.xlu0 0
  %18 = vperm.xlu0 %17, %v13
  %v19 = vpop.permute.xlu0 %18
  %22 = vset.pattern.permute.xlu0 0
  %23 = vperm.xlu0 %22, %v14
  %v24 = vpop.permute.xlu0 %23
  %v27 = vlaneseq
  %v28 = vshrl.u32 %v27, 7
  %v29 = vsub.s32 0, %v28
  %v30 = vrot.slane %v15, %v29
  %v32 = vmul.f32 %v19, %v30
  %v33 = vmul.f32 %v24, %v30
  %v34 = vand.u32 2147483647, %v32
  %vm35 = vcmp.le.f32.partialorder %v34, 0.7853982
  %vm36 = vcmp.lt.s32.totalorder %v32, 0
  %v37 = vand.u32 %v32, 2139095040
  %v38 = vshrl.u32 %v37, 23
  %v39 = vsub.s32 %v38, 127
  %v40 = vand.u32 2147483647, %v32
  %v41 = vand.u32 %v40, 8388607
  %v42 = vor.u32 %v41, 8388608
  %v43 = vsub.s32 0, %v42
  %v44 = vadd.s32 %v39, 1
  %vm45 = vcmp.gt.s32.totalorder %v44, 0
  %v46 = vsel %vm45, %v44, 0
  %v47 = vshrl.u32 %v46, 5
  %v48 = vand.u32 %v46, 31
  %v49 = vsub.s32 32, %v48
  %v50 = vshrl.u32 683565275, %v49
  %v51 = vshll.u32 683565275, %v48
  %v52 = vshrl.u32 2475754826, %v49
  %v53 = vor.u32 %v51, %v52
  %v54 = vshll.u32 2475754826, %v48
  %v55 = vshrl.u32 2131351028, %v49
  %v56 = vor.u32 %v54, %v55
  %v57 = vshll.u32 2131351028, %v48
  %v58 = vshrl.u32 2102212464, %v49
  %v59 = vor.u32 %v57, %v58
  %v60 = vshll.u32 2102212464, %v48
  %v61 = vshrl.u32 920167782, %v49
  %v62 = vor.u32 %v60, %v61
  %v63 = vshll.u32 920167782, %v48
  %v64 = vshrl.u32 1326507024, %v49
  %v65 = vor.u32 %v63, %v64
  %vm66 = vcmp.lt.s32.totalorder %v47, 1
  %vm67 = vcmp.lt.s32.totalorder %v47, 2
  %vm68 = vcmp.lt.s32.totalorder %v47, 3
  %vm69 = vcmp.lt.s32.totalorder %v47, 4
  %v70 = vsel %vm66, %v50, %v53
  %v71 = vsel %vm69, %v59, 2102212464
  %v72 = vsel %vm68, %v56, %v71
  %v73 = vsel %vm67, %v70, %v72
  %v74 = vsel %vm66, %v53, %v56
  %v75 = vsel %vm69, %v62, 920167782
  %v76 = vsel %vm68, %v59, %v75
  %v77 = vsel %vm67, %v74, %v76
  %v78 = vsel %vm66, %v56, %v59
  %v79 = vsel %vm69, %v65, 1326507024
  %v80 = vsel %vm68, %v62, %v79
  %v81 = vsel %vm67, %v78, %v80
  %v82 = vshll.u32 %v42, 8
  %v83 = vmul.u32.u64.compose %v82, %v81
  %v84 = vextract.low.u32 %v83
  %v85 = vextract.high.u32 %v83
  %v86 = vmul.u32.u64.compose %v82, %v77
  %v87 = vextract.low.u32 %v86
  %v88 = vextract.high.u32 %v86
  %v89 = vmul.u32 %v82, %v73
  %v90 = vadd.s32 %v85, %v87
  %vm91 = vc.u32 %v85, %v87
  %v92 = vadd.s32 %v88, 1
  %v93 = vsel %vm91, %v92, %v88
  %v94 = vadd.s32 %v89, %v93
  %v95 = vadd.s32 %v94, 536870912
  %v96 = vshrl.u32 %v95, 30
  %v97 = vshll.u32 %v96, 30
  %v98 = vsub.s32 %v94, %v97
  %vm99 = vcmp.lt.s32.totalorder %v98, 0
  %v100 = vsub.s32 0, %v98
  %v101 = vsel %vm99, %v100, %v98
  %v102 = vclz %v101
  %v103 = vsub.s32 %v102, 2
  %vm104 = vcmp.gt.s32.totalorder 0, %v103
  %v105 = vsel %vm104, 0, %v103
  %v106 = vsub.s32 32, %v105
  %v107 = vshll.u32 %v98, %v105
  %v108 = vshrl.u32 %v90, %v106
  %v109 = vor.u32 %v107, %v108
  %v110 = vsub.s32 4294967266, %v105
  %v111 = vadd.s32 %v110, 127
  %v112 = vshll.u32 %v111, 23
  %v113 = vor.u32 4788187, %v112
  %v114 = vand.u32 2147483647, %v113
  %v116 = vcvt.s32.f32 %v109
  %v117 = vmul.f32 %v116, %v114
  %v118 = vxor.u32 %v117, 2147483648
  %v119 = vsel %vm36, %v118, %v117
  %v120 = vsub.s32 4, %v96
  %v121 = vsel %vm36, %v120, %v96
  %v122 = vsel %vm35, %v32, %v119
  %v123 = vsel %vm35, 0, %v121
  %v124 = vcosq.f32.pop %v122
  %v125 = vsinq.f32.pop %v122
  %vm126 = vweird.f32 %v32
  %v127 = vand.u32 %v123, 3
  %vm128 = vcmp.lt.s32.totalorder %v127, 2
  %vm129 = vcmp.eq.s32.totalorder %v127, 0
  %v130 = vxor.u32 %v125, 2147483648
  %v131 = vsel %vm129, %v124, %v130
  %vm132 = vcmp.eq.s32.totalorder %v127, 2
  %v133 = vxor.u32 %v124, 2147483648
  %v134 = vsel %vm132, %v133, %v125
  %v135 = vsel %vm128, %v131, %v134
  %v136 = vsel %vm126, nan, %v135
  %v137 = vand.u32 2147483647, %v33
  %vm138 = vcmp.le.f32.partialorder %v137, 0.7853982
  %vm139 = vcmp.lt.s32.totalorder %v33, 0
  %v140 = vand.u32 %v33, 2139095040
  %v141 = vshrl.u32 %v140, 23
  %v142 = vsub.s32 %v141, 127
  %v143 = vand.u32 2147483647, %v33
  %v144 = vand.u32 %v143, 8388607
  %v145 = vor.u32 %v144, 8388608
  %v146 = vsub.s32 0, %v145
  %v147 = vadd.s32 %v142, 1
  %vm148 = vcmp.gt.s32.totalorder %v147, 0
  %v149 = vsel %vm148, %v147, 0
  %v150 = vshrl.u32 %v149, 5
  %v151 = vand.u32 %v149, 31
  %v152 = vsub.s32 32, %v151
  %v153 = vshrl.u32 683565275, %v152
  %v154 = vshll.u32 683565275, %v151
  %v155 = vshrl.u32 2475754826, %v152
  %v156 = vor.u32 %v154, %v155
  %v157 = vshll.u32 2475754826, %v151
  %v158 = vshrl.u32 2131351028, %v152
  %v159 = vor.u32 %v157, %v158
  %v160 = vshll.u32 2131351028, %v151
  %v161 = vshrl.u32 2102212464, %v152
  %v162 = vor.u32 %v160, %v161
  %v163 = vshll.u32 2102212464, %v151
  %v164 = vshrl.u32 920167782, %v152
  %v165 = vor.u32 %v163, %v164
  %v166 = vshll.u32 920167782, %v151
  %v167 = vshrl.u32 1326507024, %v152
  %v168 = vor.u32 %v166, %v167
  %vm169 = vcmp.lt.s32.totalorder %v150, 1
  %vm170 = vcmp.lt.s32.totalorder %v150, 2
  %vm171 = vcmp.lt.s32.totalorder %v150, 3
  %vm172 = vcmp.lt.s32.totalorder %v150, 4
  %v173 = vsel %vm169, %v153, %v156
  %v174 = vsel %vm172, %v162, 2102212464
  %v175 = vsel %vm171, %v159, %v174
  %v176 = vsel %vm170, %v173, %v175
  %v177 = vsel %vm169, %v156, %v159
  %v178 = vsel %vm172, %v165, 920167782
  %v179 = vsel %vm171, %v162, %v178
  %v180 = vsel %vm170, %v177, %v179
  %v181 = vsel %vm169, %v159, %v162
  %v182 = vsel %vm172, %v168, 1326507024
  %v183 = vsel %vm171, %v165, %v182
  %v184 = vsel %vm170, %v181, %v183
  %v185 = vshll.u32 %v145, 8
  %v186 = vmul.u32.u64.compose %v185, %v184
  %v187 = vextract.low.u32 %v186
  %v188 = vextract.high.u32 %v186
  %v189 = vmul.u32.u64.compose %v185, %v180
  %v190 = vextract.low.u32 %v189
  %v191 = vextract.high.u32 %v189
  %v192 = vmul.u32 %v185, %v176
  %v193 = vadd.s32 %v188, %v190
  %vm194 = vc.u32 %v188, %v190
  %v195 = vadd.s32 %v191, 1
  %v196 = vsel %vm194, %v195, %v191
  %v197 = vadd.s32 %v192, %v196
  %v198 = vadd.s32 %v197, 536870912
  %v199 = vshrl.u32 %v198, 30
  %v200 = vshll.u32 %v199, 30
  %v201 = vsub.s32 %v197, %v200
  %vm202 = vcmp.lt.s32.totalorder %v201, 0
  %v203 = vsub.s32 0, %v201
  %v204 = vsel %vm202, %v203, %v201
  %v205 = vclz %v204
  %v206 = vsub.s32 %v205, 2
  %vm207 = vcmp.gt.s32.totalorder 0, %v206
  %v208 = vsel %vm207, 0, %v206
  %v209 = vsub.s32 32, %v208
  %v210 = vshll.u32 %v201, %v208
  %v211 = vshrl.u32 %v193, %v209
  %v212 = vor.u32 %v210, %v211
  %v213 = vsub.s32 4294967266, %v208
  %v214 = vadd.s32 %v213, 127
  %v215 = vshll.u32 %v214, 23
  %v216 = vor.u32 4788187, %v215
  %v217 = vand.u32 2147483647, %v216
  %v219 = vcvt.s32.f32 %v212
  %v220 = vmul.f32 %v219, %v217
  %v221 = vxor.u32 %v220, 2147483648
  %v222 = vsel %vm139, %v221, %v220
  %v223 = vsub.s32 4, %v199
  %v224 = vsel %vm139, %v223, %v199
  %v225 = vsel %vm138, %v33, %v222
  %v226 = vsel %vm138, 0, %v224
  %v227 = vcosq.f32.pop %v225
  %v228 = vsinq.f32.pop %v225
  %vm229 = vweird.f32 %v33
  %v230 = vand.u32 %v226, 3
  %vm231 = vcmp.lt.s32.totalorder %v230, 2
  %vm232 = vcmp.eq.s32.totalorder %v230, 0
  %v233 = vxor.u32 %v228, 2147483648
  %v234 = vsel %vm232, %v227, %v233
  %vm235 = vcmp.eq.s32.totalorder %v230, 2
  %v236 = vxor.u32 %v227, 2147483648
  %v237 = vsel %vm235, %v236, %v228
  %v238 = vsel %vm231, %v234, %v237
  %v239 = vsel %vm229, nan, %v238
  %vm240 = vcmask 130048
  %241 = vst.msk [vmem:[%s2] sm:$0xff] %vm240, %v136
  %242 = vst.msk [vmem:[%s2 + $0x8] sm:$0xff] %vm240, %v239
  %v243 = vand.u32 2147483647, %v32
  %vm244 = vcmp.le.f32.partialorder %v243, 0.7853982
  %vm245 = vcmp.lt.s32.totalorder %v32, 0
  %v246 = vand.u32 %v32, 2139095040
  %v247 = vshrl.u32 %v246, 23
  %v248 = vsub.s32 %v247, 127
  %v249 = vand.u32 2147483647, %v32
  %v250 = vand.u32 %v249, 8388607
  %v251 = vor.u32 %v250, 8388608
  %v252 = vsub.s32 0, %v251
  %v253 = vadd.s32 %v248, 1
  %vm254 = vcmp.gt.s32.totalorder %v253, 0
  %v255 = vsel %vm254, %v253, 0
  %v256 = vshrl.u32 %v255, 5
  %v257 = vand.u32 %v255, 31
  %v258 = vsub.s32 32, %v257
  %v259 = vshrl.u32 683565275, %v258
  %v260 = vshll.u32 683565275, %v257
  %v261 = vshrl.u32 2475754826, %v258
  %v262 = vor.u32 %v260, %v261
  %v263 = vshll.u32 2475754826, %v257
  %v264 = vshrl.u32 2131351028, %v258
  %v265 = vor.u32 %v263, %v264
  %v266 = vshll.u32 2131351028, %v257
  %v267 = vshrl.u32 2102212464, %v258
  %v268 = vor.u32 %v266, %v267
  %v269 = vshll.u32 2102212464, %v257
  %v270 = vshrl.u32 920167782, %v258
  %v271 = vor.u32 %v269, %v270
  %v272 = vshll.u32 920167782, %v257
  %v273 = vshrl.u32 1326507024, %v258
  %v274 = vor.u32 %v272, %v273
  %vm275 = vcmp.lt.s32.totalorder %v256, 1
  %vm276 = vcmp.lt.s32.totalorder %v256, 2
  %vm277 = vcmp.lt.s32.totalorder %v256, 3
  %vm278 = vcmp.lt.s32.totalorder %v256, 4
  %v279 = vsel %vm275, %v259, %v262
  %v280 = vsel %vm278, %v268, 2102212464
  %v281 = vsel %vm277, %v265, %v280
  %v282 = vsel %vm276, %v279, %v281
  %v283 = vsel %vm275, %v262, %v265
  %v284 = vsel %vm278, %v271, 920167782
  %v285 = vsel %vm277, %v268, %v284
  %v286 = vsel %vm276, %v283, %v285
  %v287 = vsel %vm275, %v265, %v268
  %v288 = vsel %vm278, %v274, 1326507024
  %v289 = vsel %vm277, %v271, %v288
  %v290 = vsel %vm276, %v287, %v289
  %v291 = vshll.u32 %v251, 8
  %v292 = vmul.u32.u64.compose %v291, %v290
  %v293 = vextract.low.u32 %v292
  %v294 = vextract.high.u32 %v292
  %v295 = vmul.u32.u64.compose %v291, %v286
  %v296 = vextract.low.u32 %v295
  %v297 = vextract.high.u32 %v295
  %v298 = vmul.u32 %v291, %v282
  %v299 = vadd.s32 %v294, %v296
  %vm300 = vc.u32 %v294, %v296
  %v301 = vadd.s32 %v297, 1
  %v302 = vsel %vm300, %v301, %v297
  %v303 = vadd.s32 %v298, %v302
  %v304 = vadd.s32 %v303, 536870912
  %v305 = vshrl.u32 %v304, 30
  %v306 = vshll.u32 %v305, 30
  %v307 = vsub.s32 %v303, %v306
  %vm308 = vcmp.lt.s32.totalorder %v307, 0
  %v309 = vsub.s32 0, %v307
  %v310 = vsel %vm308, %v309, %v307
  %v311 = vclz %v310
  %v312 = vsub.s32 %v311, 2
  %vm313 = vcmp.gt.s32.totalorder 0, %v312
  %v314 = vsel %vm313, 0, %v312
  %v315 = vsub.s32 32, %v314
  %v316 = vshll.u32 %v307, %v314
  %v317 = vshrl.u32 %v299, %v315
  %v318 = vor.u32 %v316, %v317
  %v319 = vsub.s32 4294967266, %v314
  %v320 = vadd.s32 %v319, 127
  %v321 = vshll.u32 %v320, 23
  %v322 = vor.u32 4788187, %v321
  %v323 = vand.u32 2147483647, %v322
  %v325 = vcvt.s32.f32 %v318
  %v326 = vmul.f32 %v325, %v323
  %v327 = vxor.u32 %v326, 2147483648
  %v328 = vsel %vm245, %v327, %v326
  %v329 = vsub.s32 4, %v305
  %v330 = vsel %vm245, %v329, %v305
  %v331 = vsel %vm244, %v32, %v328
  %v332 = vsel %vm244, 0, %v330
  %v333 = vcosq.f32.pop %v331
  %v334 = vsinq.f32.pop %v331
  %vm335 = vweird.f32 %v32
  %v336 = vadd.s32 %v332, 3
  %v337 = vand.u32 %v336, 3
  %vm338 = vcmp.lt.s32.totalorder %v337, 2
  %vm339 = vcmp.eq.s32.totalorder %v337, 0
  %v340 = vxor.u32 %v334, 2147483648
  %v341 = vsel %vm339, %v333, %v340
  %vm342 = vcmp.eq.s32.totalorder %v337, 2
  %v343 = vxor.u32 %v333, 2147483648
  %v344 = vsel %vm342, %v343, %v334
  %v345 = vsel %vm338, %v341, %v344
  %v346 = vsel %vm335, nan, %v345
  %v347 = vand.u32 2147483647, %v33
  %vm348 = vcmp.le.f32.partialorder %v347, 0.7853982
  %vm349 = vcmp.lt.s32.totalorder %v33, 0
  %v350 = vand.u32 %v33, 2139095040
  %v351 = vshrl.u32 %v350, 23
  %v352 = vsub.s32 %v351, 127
  %v353 = vand.u32 2147483647, %v33
  %v354 = vand.u32 %v353, 8388607
  %v355 = vor.u32 %v354, 8388608
  %v356 = vsub.s32 0, %v355
  %v357 = vadd.s32 %v352, 1
  %vm358 = vcmp.gt.s32.totalorder %v357, 0
  %v359 = vsel %vm358, %v357, 0
  %v360 = vshrl.u32 %v359, 5
  %v361 = vand.u32 %v359, 31
  %v362 = vsub.s32 32, %v361
  %v363 = vshrl.u32 683565275, %v362
  %v364 = vshll.u32 683565275, %v361
  %v365 = vshrl.u32 2475754826, %v362
  %v366 = vor.u32 %v364, %v365
  %v367 = vshll.u32 2475754826, %v361
  %v368 = vshrl.u32 2131351028, %v362
  %v369 = vor.u32 %v367, %v368
  %v370 = vshll.u32 2131351028, %v361
  %v371 = vshrl.u32 2102212464, %v362
  %v372 = vor.u32 %v370, %v371
  %v373 = vshll.u32 2102212464, %v361
  %v374 = vshrl.u32 920167782, %v362
  %v375 = vor.u32 %v373, %v374
  %v376 = vshll.u32 920167782, %v361
  %v377 = vshrl.u32 1326507024, %v362
  %v378 = vor.u32 %v376, %v377
  %vm379 = vcmp.lt.s32.totalorder %v360, 1
  %vm380 = vcmp.lt.s32.totalorder %v360, 2
  %vm381 = vcmp.lt.s32.totalorder %v360, 3
  %vm382 = vcmp.lt.s32.totalorder %v360, 4
  %v383 = vsel %vm379, %v363, %v366
  %v384 = vsel %vm382, %v372, 2102212464
  %v385 = vsel %vm381, %v369, %v384
  %v386 = vsel %vm380, %v383, %v385
  %v387 = vsel %vm379, %v366, %v369
  %v388 = vsel %vm382, %v375, 920167782
  %v389 = vsel %vm381, %v372, %v388
  %v390 = vsel %vm380, %v387, %v389
  %v391 = vsel %vm379, %v369, %v372
  %v392 = vsel %vm382, %v378, 1326507024
  %v393 = vsel %vm381, %v375, %v392
  %v394 = vsel %vm380, %v391, %v393
  %v395 = vshll.u32 %v355, 8
  %v396 = vmul.u32.u64.compose %v395, %v394
  %v397 = vextract.low.u32 %v396
  %v398 = vextract.high.u32 %v396
  %v399 = vmul.u32.u64.compose %v395, %v390
  %v400 = vextract.low.u32 %v399
  %v401 = vextract.high.u32 %v399
  %v402 = vmul.u32 %v395, %v386
  %v403 = vadd.s32 %v398, %v400
  %vm404 = vc.u32 %v398, %v400
  %v405 = vadd.s32 %v401, 1
  %v406 = vsel %vm404, %v405, %v401
  %v407 = vadd.s32 %v402, %v406
  %v408 = vadd.s32 %v407, 536870912
  %v409 = vshrl.u32 %v408, 30
  %v410 = vshll.u32 %v409, 30
  %v411 = vsub.s32 %v407, %v410
  %vm412 = vcmp.lt.s32.totalorder %v411, 0
  %v413 = vsub.s32 0, %v411
  %v414 = vsel %vm412, %v413, %v411
  %v415 = vclz %v414
  %v416 = vsub.s32 %v415, 2
  %vm417 = vcmp.gt.s32.totalorder 0, %v416
  %v418 = vsel %vm417, 0, %v416
  %v419 = vsub.s32 32, %v418
  %v420 = vshll.u32 %v411, %v418
  %v421 = vshrl.u32 %v403, %v419
  %v422 = vor.u32 %v420, %v421
  %v423 = vsub.s32 4294967266, %v418
  %v424 = vadd.s32 %v423, 127
  %v425 = vshll.u32 %v424, 23
  %v426 = vor.u32 4788187, %v425
  %v427 = vand.u32 2147483647, %v426
  %v429 = vcvt.s32.f32 %v422
  %v430 = vmul.f32 %v429, %v427
  %v431 = vxor.u32 %v430, 2147483648
  %v432 = vsel %vm349, %v431, %v430
  %v433 = vsub.s32 4, %v409
  %v434 = vsel %vm349, %v433, %v409
  %v435 = vsel %vm348, %v33, %v432
  %v436 = vsel %vm348, 0, %v434
  %v437 = vcosq.f32.pop %v435
  %v438 = vsinq.f32.pop %v435
  %vm439 = vweird.f32 %v33
  %v440 = vadd.s32 %v436, 3
  %v441 = vand.u32 %v440, 3
  %vm442 = vcmp.lt.s32.totalorder %v441, 2
  %vm443 = vcmp.eq.s32.totalorder %v441, 0
  %v444 = vxor.u32 %v438, 2147483648
  %v445 = vsel %vm443, %v437, %v444
  %vm446 = vcmp.eq.s32.totalorder %v441, 2
  %v447 = vxor.u32 %v437, 2147483648
  %v448 = vsel %vm446, %v447, %v438
  %v449 = vsel %vm442, %v445, %v448
  %v450 = vsel %vm439, nan, %v449
  %451 = vst.msk [vmem:[%s3] sm:$0xff] %vm240, %v346
  %452 = vst.msk [vmem:[%s3 + $0x8] sm:$0xff] %vm240, %v450
  // Predicated region
  $region10: #{llama4_text_rotary_embedding.1} parent=0 // pred_check
    _
  $region11: #{llama4_text_rotary_embedding.1} parent=0 // pred_check_branch
    %454 = sbr.rel (0) target = $region13
  $region12: #{llama4_text_rotary_embedding.1} parent=0 // pred_region
    _
  $region13: #{llama4_text_rotary_embedding.1} parent=0 // pred_fallthru
    _
  // Predicated region
  $region14: #{llama4_text_rotary_embedding.1} parent=0 // pred_check
    _
  $region15: #{llama4_text_rotary_embedding.1} parent=0 // pred_check_branch
    %456 = sbr.rel (0) target = $region17
  $region16: #{llama4_text_rotary_embedding.1} parent=0 // pred_region
    _
  $region17: #{llama4_text_rotary_embedding.1} parent=0 // pred_fallthru
    _
  // Predicated region
  $region18: #{llama4_text_rotary_embedding.1} parent=0 // pred_check
    _
  $region19: #{llama4_text_rotary_embedding.1} parent=0 // pred_check_branch
    %458 = sbr.rel (0) target = $region21
  $region20: #{llama4_text_rotary_embedding.1} parent=0 // pred_region
    _
  $region21: #{llama4_text_rotary_embedding.1} parent=0 // pred_fallthru
    _
  // Predicated region
  $region22: #{llama4_text_rotary_embedding.1} parent=0 // pred_check
    _
  $region23: #{llama4_text_rotary_embedding.1} parent=0 // pred_check_branch
    %460 = sbr.rel (0) target = $region25
  $region24: #{llama4_text_rotary_embedding.1} parent=0 // pred_region
    _
  $region25: #{llama4_text_rotary_embedding.1} parent=0 // pred_fallthru
    _

</llo_original>
